<compile_context>
chip_gen: v7x
topology: tpu7x:2x2x1
jax: 0.10.0
libtpu: 0.0.40
codegen_flags: <defaults>
</compile_context>

<pallas_src>
import math

import jax
import jax.numpy as jnp
from jax.experimental import pallas as pl
from jax.experimental.pallas import tpu as pltpu


def _round_up(x, m):
    return ((x + m - 1) // m) * m


def _critic_kernel(x_ref, w_in_ref, w2a_ref, w3_ref, b12_ref, b3_ref, q_ref):
    # One batch tile (tm rows) per grid step; weights/biases are VMEM-resident.
    H = w2a_ref.shape[0]

    x = x_ref[...]                                         # (tm, S+A) f32
    # Block-diagonal fused first push: y = [state @ W1 | action @ W2b]
    y = jnp.dot(x, w_in_ref[...], preferred_element_type=jnp.float32)  # (tm, 2H)

    b1 = b12_ref[0:1, :]                                   # (1, H)
    b2 = b12_ref[1:2, :]                                   # (1, H)

    h1 = jnp.tanh(y[:, :H] + b1)
    h2 = jnp.tanh(
        jnp.dot(h1, w2a_ref[...], preferred_element_type=jnp.float32)
        + y[:, H:] + b2
    )

    # Output layer has N=1: VPU multiply + XLU row-reduce instead of an MXU
    # push, then relayout to a lane-dense (1, tm) row for an unmasked store.
    q = jnp.sum(h2 * w3_ref[...], axis=-1) + b3_ref[0, 0]  # (tm,)
    q_ref[...] = q[None, :].astype(q_ref.dtype)            # (1, tm)


def critic_forward(state, action, params, *, block_m=1024):
    """Run the Critic forward pass with a batch-tiled Pallas kernel."""
    w_in, w2a, w3_row, b12, b3 = params
    batch = state.shape[0]
    if batch == 0:
        return jnp.zeros((0, 1), jnp.float32)

    state_dim = state.shape[1]
    action_dim = action.shape[1]
    in_dim = state_dim + action_dim
    hidden_dim = w2a.shape[0]

    # Batch tile: multiple of 128 so the lane-dense output block stays aligned.
    block_m = max(128, _round_up(block_m, 128))
    tm = min(block_m, _round_up(batch, 128))
    padded = _round_up(batch, tm)

    # Merge state/action into one input stream (single DMA per step).
    x = jnp.concatenate([state, action], axis=1).astype(jnp.float32)
    if padded != batch:
        x = jnp.pad(x, ((0, padded - batch), (0, 0)))

    grid = (padded // tm,)
    resident = lambda i: (0, 0)   # weights / biases stay put across the grid

    # NOTE(v7x): if the trace shows one TensorCore idle, switch this axis to
    # pltpu.CORE_PARALLEL so each TC gets half of the batch tiles.
    out = pl.pallas_call(
        _critic_kernel,
        out_shape=jax.ShapeDtypeStruct((1, padded), jnp.float32),
        grid=grid,
        in_specs=[
            pl.BlockSpec((tm, in_dim), lambda i: (i, 0)),
            pl.BlockSpec((in_dim, 2 * hidden_dim), resident),
            pl.BlockSpec((hidden_dim, hidden_dim), resident),
            pl.BlockSpec((1, hidden_dim), resident),
            pl.BlockSpec((2, hidden_dim), resident),
            pl.BlockSpec(memory_space=pltpu.MemorySpace.SMEM),   # b3 scalar
        ],
        out_specs=pl.BlockSpec((1, tm), lambda i: (0, i)),
        compiler_params=pltpu.CompilerParams(
            dimension_semantics=("parallel",),
            vmem_limit_bytes=32 * 1024 * 1024,   # v5e defaults to 16 MiB
        ),
    )(x, w_in, w2a, w3_row, b12, b3)

    return out[0, :batch].reshape(batch, 1)


def init_critic_params(key, state_dim, action_dim):
    """Deterministic init matching the PyTorch module's shapes.

    hidden_dim = 1 if state_dim + action_dim == 0 else
                 2 ** (state_dim + action_dim - 1).bit_length().
    PyTorch-Linear-style uniform(-1/sqrt(fan_in), 1/sqrt(fan_in)).
    Packing for the kernel:
      * w_in  : (S+A, 2H) block-diagonal [[W1, 0], [0, W2b]]
      * w2a   : (H, H)   — the hidden->hidden half of l2's weight
      * w3_row: (1, H)   — l3's weight as a row (VPU reduction)
      * b12   : (2, H)   — b1 / b2 packed
      * b3    : (1, 1)   — scalar bias (SMEM)
    """
    if state_dim + action_dim == 0:
        hidden_dim = 1
    else:
        hidden_dim = 2 ** ((state_dim + action_dim - 1).bit_length())

    ks = jax.random.split(key, 6)

    def uni(k, shape, fan_in):
        bound = 1.0 / math.sqrt(fan_in) if fan_in > 0 else 0.0
        return jax.random.uniform(k, shape, jnp.float32, -bound, bound)

    # l1: Linear(state_dim -> hidden_dim)
    w1 = uni(ks[0], (state_dim, hidden_dim), state_dim)
    b1 = uni(ks[1], (1, hidden_dim), state_dim)
    # l2: Linear(hidden_dim + action_dim -> hidden_dim), split along its input
    fan2 = hidden_dim + action_dim
    w2 = uni(ks[2], (fan2, hidden_dim), fan2)
    w2a = w2[:hidden_dim, :]
    w2b = w2[hidden_dim:, :]
    b2 = uni(ks[3], (1, hidden_dim), fan2)
    # l3: Linear(hidden_dim -> 1), stored as a row for the VPU reduction
    w3_row = uni(ks[4], (1, hidden_dim), hidden_dim)
    b3 = uni(ks[5], (1, 1), hidden_dim)

    # Block-diagonal fused input weight: x @ w_in == [state@W1 | action@W2b]
    w_in = jnp.zeros((state_dim + action_dim, 2 * hidden_dim), jnp.float32)
    w_in = w_in.at[:state_dim, :hidden_dim].set(w1)
    w_in = w_in.at[state_dim:, hidden_dim:].set(w2b)

    b12 = jnp.concatenate([b1, b2], axis=0)     # (2, H)
    return (w_in, w2a, w3_row, b12, b3), hidden_dim


def _reference_forward(state, action, params):
    """Pure-JAX reference (mirrors the PyTorch forward exactly)."""
    w_in, w2a, w3_row, b12, b3 = params
    S = state.shape[1]
    H = w2a.shape[0]
    w1 = w_in[:S, :H]
    w2b = w_in[S:, H:]
    s = state.astype(jnp.float32)
    a = action.astype(jnp.float32)
    q = jnp.tanh(s @ w1 + b12[0:1, :])
    q = jnp.tanh(q @ w2a + a @ w2b + b12[1:2, :])
    return q @ w3_row.T + b3[0, 0]


if __name__ == "__main__":
    state_dim = 24
    action_dim = 8

    key = jax.random.PRNGKey(0)
    k_param, k_state, k_action = jax.random.split(key, 3)
    params, hidden_dim = init_critic_params(k_param, state_dim, action_dim)

    # Small demo batch (single grid step, padded to one 128-row tile).
    batch = 8
    state = jax.random.normal(k_state, (batch, state_dim), jnp.float32)
    action = jax.random.normal(k_action, (batch, action_dim), jnp.float32)

    q = jax.block_until_ready(critic_forward(state, action, params))
    q_ref = _reference_forward(state, action, params)
    assert q.shape == (batch, 1), q.shape
    assert jnp.allclose(q, q_ref, atol=1e-5, rtol=1e-5)

    # Larger, non-divisible batch exercising the multi-step tiled/padded path.
    batch2 = 300
    state2 = jax.random.normal(k_state, (batch2, state_dim), jnp.float32)
    action2 = jax.random.normal(k_action, (batch2, action_dim), jnp.float32)
    q2 = jax.block_until_ready(
        critic_forward(state2, action2, params, block_m=128))
    q2_ref = _reference_forward(state2, action2, params)
    assert q2.shape == (batch2, 1), q2.shape
    assert jnp.allclose(q2, q2_ref, atol=1e-5, rtol=1e-5)

    print("KERNEL_OK")
</pallas_src>

<mosaic_0001>
module attributes {stable_mosaic.version = 11 : i64} {
  func.func @_critic_kernel(%arg0: i32, %arg1: memref<128x32xf32, #tpu.memory_space<vmem>>, %arg2: memref<32x64xf32, #tpu.memory_space<vmem>>, %arg3: memref<32x32xf32, #tpu.memory_space<vmem>>, %arg4: memref<1x32xf32, #tpu.memory_space<vmem>>, %arg5: memref<2x32xf32, #tpu.memory_space<vmem>>, %arg6: memref<1x1xf32, #tpu.memory_space<smem>>, %arg7: memref<1x128xf32, #tpu.memory_space<vmem>>) attributes {dimension_semantics = [#tpu.dimension_semantics<parallel>], iteration_bounds = array<i64: 1>, scalar_prefetch = 0 : i64, scratch_operands = 0 : i64, tpu.core_type = #tpu.core_type<tc>, window_params = [{transform_indices = @transform_0, window_bounds = array<i64: 128, 32>}, {pipeline_mode = #tpu.pipeline_mode<synchronous>, transform_indices = @transform_1, window_bounds = array<i64: 32, 64>}, {pipeline_mode = #tpu.pipeline_mode<synchronous>, transform_indices = @transform_2, window_bounds = array<i64: 32, 32>}, {pipeline_mode = #tpu.pipeline_mode<synchronous>, transform_indices = @transform_3, window_bounds = array<i64: 1, 32>}, {pipeline_mode = #tpu.pipeline_mode<synchronous>, transform_indices = @transform_4, window_bounds = array<i64: 2, 32>}, {transform_indices = @transform_5, window_bounds = array<i64: 1, 1>}, {transform_indices = @transform_6, window_bounds = array<i64: 1, 128>}]} {
    %c0 = arith.constant 0 : index
    %c0_0 = arith.constant 0 : index
    %0 = vector.load %arg1[%c0, %c0_0] : memref<128x32xf32, #tpu.memory_space<vmem>>, vector<128x32xf32>
    %c0_1 = arith.constant 0 : index
    %c0_2 = arith.constant 0 : index
    %1 = vector.load %arg2[%c0_1, %c0_2] : memref<32x64xf32, #tpu.memory_space<vmem>>, vector<32x64xf32>
    %cst = arith.constant dense<0.000000e+00> : vector<128x64xf32>
    %2 = tpu.matmul %0, %1, %cst {dimension_numbers = #tpu.dot_dimension_numbers<[1], [0], [0], [1], [0, 0, 1, 1], [], []>} : vector<128x32xf32>, vector<32x64xf32>, vector<128x64xf32> -> vector<128x64xf32>
    %c0_3 = arith.constant 0 : index
    %c0_4 = arith.constant 0 : index
    %3 = vector.load %arg5[%c0_3, %c0_4] : memref<2x32xf32, #tpu.memory_space<vmem>>, vector<1x32xf32>
    %c1 = arith.constant 1 : index
    %c0_5 = arith.constant 0 : index
    %4 = vector.load %arg5[%c1, %c0_5] : memref<2x32xf32, #tpu.memory_space<vmem>>, vector<1x32xf32>
    %5 = vector.extract_strided_slice %2 {offsets = [0, 0], sizes = [128, 32], strides = [1, 1]} : vector<128x64xf32> to vector<128x32xf32>
    %6 = vector.broadcast %3 : vector<1x32xf32> to vector<128x32xf32>
    %7 = arith.addf %5, %6 : vector<128x32xf32>
    %8 = math.tanh %7 : vector<128x32xf32>
    %c0_6 = arith.constant 0 : index
    %c0_7 = arith.constant 0 : index
    %9 = vector.load %arg3[%c0_6, %c0_7] : memref<32x32xf32, #tpu.memory_space<vmem>>, vector<32x32xf32>
    %cst_8 = arith.constant dense<0.000000e+00> : vector<128x32xf32>
    %10 = tpu.matmul %8, %9, %cst_8 {dimension_numbers = #tpu.dot_dimension_numbers<[1], [0], [0], [1], [0, 0, 1, 1], [], []>} : vector<128x32xf32>, vector<32x32xf32>, vector<128x32xf32> -> vector<128x32xf32>
    %11 = vector.extract_strided_slice %2 {offsets = [0, 32], sizes = [128, 32], strides = [1, 1]} : vector<128x64xf32> to vector<128x32xf32>
    %12 = arith.addf %10, %11 : vector<128x32xf32>
    %13 = vector.broadcast %4 : vector<1x32xf32> to vector<128x32xf32>
    %14 = arith.addf %12, %13 : vector<128x32xf32>
    %15 = math.tanh %14 : vector<128x32xf32>
    %c0_9 = arith.constant 0 : index
    %c0_10 = arith.constant 0 : index
    %16 = vector.load %arg4[%c0_9, %c0_10] : memref<1x32xf32, #tpu.memory_space<vmem>>, vector<1x32xf32>
    %17 = vector.broadcast %16 : vector<1x32xf32> to vector<128x32xf32>
    %18 = arith.mulf %15, %17 : vector<128x32xf32>
    %cst_11 = arith.constant dense<0.000000e+00> : vector<128xf32>
    %19 = vector.multi_reduction <add>, %18, %cst_11 [1] : vector<128x32xf32> to vector<128xf32>
    %c0_12 = arith.constant 0 : index
    %c0_13 = arith.constant 0 : index
    %20 = memref.load %arg6[%c0_12, %c0_13] : memref<1x1xf32, #tpu.memory_space<smem>>
    %21 = vector.broadcast %20 : f32 to vector<128xf32>
    %22 = arith.addf %19, %21 : vector<128xf32>
    %23 = vector.shape_cast %22 : vector<128xf32> to vector<1x128xf32>
    %c0_14 = arith.constant 0 : index
    %c0_15 = arith.constant 0 : index
    %24 = vector.load %arg7[%c0_14, %c0_15] : memref<1x128xf32, #tpu.memory_space<vmem>>, vector<1x128xf32>
    tpu.vector_store %arg7[%c0_14, %c0_15], %23 {strides = array<i32>} : memref<1x128xf32, #tpu.memory_space<vmem>>, vector<1x128xf32>,
    return
  }
  func.func @transform_0(%arg0: i32) -> (i32, i32) {
    %c0_i32 = arith.constant 0 : i32
    %c0_i32_0 = arith.constant 0 : i32
    return %arg0, %c0_i32 : i32, i32
  }
  func.func @transform_1(%arg0: i32) -> (i32, i32) {
    %c0_i32 = arith.constant 0 : i32
    %c0_i32_0 = arith.constant 0 : i32
    %c0_i32_1 = arith.constant 0 : i32
    return %c0_i32, %c0_i32_0 : i32, i32
  }
  func.func @transform_2(%arg0: i32) -> (i32, i32) {
    %c0_i32 = arith.constant 0 : i32
    %c0_i32_0 = arith.constant 0 : i32
    %c0_i32_1 = arith.constant 0 : i32
    return %c0_i32, %c0_i32_0 : i32, i32
  }
  func.func @transform_3(%arg0: i32) -> (i32, i32) {
    %c0_i32 = arith.constant 0 : i32
    %c0_i32_0 = arith.constant 0 : i32
    %c0_i32_1 = arith.constant 0 : i32
    return %c0_i32, %c0_i32_0 : i32, i32
  }
  func.func @transform_4(%arg0: i32) -> (i32, i32) {
    %c0_i32 = arith.constant 0 : i32
    %c0_i32_0 = arith.constant 0 : i32
    %c0_i32_1 = arith.constant 0 : i32
    return %c0_i32, %c0_i32_0 : i32, i32
  }
  func.func @transform_5(%arg0: i32) -> (i32, i32) {
    %c0_i32 = arith.constant 0 : i32
    %c0_i32_0 = arith.constant 0 : i32
    %c0_i32_1 = arith.constant 0 : i32
    return %c0_i32, %c0_i32_0 : i32, i32
  }
  func.func @transform_6(%arg0: i32) -> (i32, i32) {
    %c0_i32 = arith.constant 0 : i32
    %c0_i32_0 = arith.constant 0 : i32
    return %c0_i32, %arg0 : i32, i32
  }
}

</mosaic_0001>

<llo_original>
// kernel: tpu_custom_call.1
$region0: #{tpu_custom_call.1}
  #allocation0 [shape = 'u32[]', space=smem, size = 0x4, offset = 0x4, fixed_abs, tag = 'smem constant byte address 0x4 - core index']
  #allocation1 [shape = 'u32[144,128]{1,0:T(1,128)}', space=vmem, size = 0x12000, scoped, tag = 'internal scratch']
  #allocation2 [shape = 'f32[1,1]{1,0:T(1,128)S(6)}', space=smem, size = 0x200, scoped, tag = 'scoped memory for tpu_custom_call.1']
  %s0 = inlined_call_operand.vmem [shape: f32[128,32], index: 0, kind: input, shape index: {}]
  %s1 = inlined_call_operand.vmem [shape: f32[32,64], index: 1, kind: input, shape index: {}]
  %s2 = inlined_call_operand.vmem [shape: f32[32,32], index: 2, kind: input, shape index: {}]
  %s3 = inlined_call_operand.vmem [shape: f32[1,32], index: 3, kind: input, shape index: {}]
  %s4 = inlined_call_operand.vmem [shape: f32[2,32], index: 4, kind: input, shape index: {}]
  %s5 = inlined_call_operand.<no memory space> [shape: f32[1,1], index: 5, kind: input, shape index: {}]
  %s6 = inlined_call_operand.hbm [shape: f32[1,128], index: 6, kind: output, shape index: {}]
  %s7 = sld [smem:[#allocation0]]
  $region34: #{tpu_custom_call.1} parent=0
    _
  %s9 = ssub.s32 1, %s7
  %s10 = scalar_select 0, %s9, %s7
  %11 = sst [smem:[#allocation2]] %s5
  $region1: #{tpu_custom_call.1} parent=0
    #allocation3 [shape = 'u8[512]{0}', space=vmem, size = 0x400, scoped, tag = 'output window, operand 0, single buffered']
    #allocation4 [shape = 's32[1]{0}', space=sflag, size = 0x4, scoped, tag = 'scoped memory for tpu_custom_call.1']
    %12 = vsyncpa [#allocation4], 0
    // Predicated region
    $region2: #{tpu_custom_call.1} parent=1 // pred_check
      _
    $region3: #{tpu_custom_call.1} parent=1 // pred_check_branch
      %14 = sbr.rel (0) target = $region5
    $region4: #{tpu_custom_call.1} parent=1 // pred_region
      _
    $region5: #{tpu_custom_call.1} parent=1 // pred_fallthru
      _
    // Predicated region
    $region6: #{tpu_custom_call.1} parent=1 // pred_check
      _
    $region7: #{tpu_custom_call.1} parent=1 // pred_check_branch
      %16 = sbr.rel (0) target = $region9
    $region8: #{tpu_custom_call.1} parent=1 // pred_region
      _
    $region9: #{tpu_custom_call.1} parent=1 // pred_fallthru
      _
    // Predicated region
    $region10: #{tpu_custom_call.1} parent=1 // pred_check
      _
    $region11: #{tpu_custom_call.1} parent=1 // pred_check_branch
      %18 = sbr.rel (0) target = $region13
    $region12: #{tpu_custom_call.1} parent=1 // pred_region
      _
    $region13: #{tpu_custom_call.1} parent=1 // pred_fallthru
      _
    // Predicated region
    $region14: #{tpu_custom_call.1} parent=1 // pred_check
      _
    $region15: #{tpu_custom_call.1} parent=1 // pred_check_branch
      %20 = sbr.rel (0) target = $region17
    $region16: #{tpu_custom_call.1} parent=1 // pred_region
      _
    $region17: #{tpu_custom_call.1} parent=1 // pred_fallthru
      _
    // Predicated region
    $region18: #{tpu_custom_call.1} parent=1 // pred_check
      _
    $region19: #{tpu_custom_call.1} parent=1 // pred_check_branch
      %22 = sbr.rel (0) target = $region21
    $region20: #{tpu_custom_call.1} parent=1 // pred_region
      _
    $region21: #{tpu_custom_call.1} parent=1 // pred_fallthru
      _
    // Predicated region
    $region22: #{tpu_custom_call.1} parent=1 // pred_check
      _
    $region23: #{tpu_custom_call.1} parent=1 // pred_check_branch
      %24 = sbr.rel (0) target = $region25
    $region24: #{tpu_custom_call.1} parent=1 // pred_region
      _
    $region25: #{tpu_custom_call.1} parent=1 // pred_fallthru
      _
    %v25 = vld [vmem:[%s0] sm:$0xff]
    %v26 = vld [vmem:[%s0 + $0x8] sm:$0xff]
    %v27 = vld [vmem:[%s0 + $0x10] sm:$0xff]
    %v28 = vld [vmem:[%s0 + $0x18] sm:$0xff]
    %v29 = vld [vmem:[%s0 + $0x20] sm:$0xff]
    %v30 = vld [vmem:[%s0 + $0x28] sm:$0xff]
    %v31 = vld [vmem:[%s0 + $0x30] sm:$0xff]
    %v32 = vld [vmem:[%s0 + $0x38] sm:$0xff]
    %v33 = vld [vmem:[%s0 + $0x40] sm:$0xff]
    %v34 = vld [vmem:[%s0 + $0x48] sm:$0xff]
    %v35 = vld [vmem:[%s0 + $0x50] sm:$0xff]
    %v36 = vld [vmem:[%s0 + $0x58] sm:$0xff]
    %v37 = vld [vmem:[%s0 + $0x60] sm:$0xff]
    %v38 = vld [vmem:[%s0 + $0x68] sm:$0xff]
    %v39 = vld [vmem:[%s0 + $0x70] sm:$0xff]
    %v40 = vld [vmem:[%s0 + $0x78] sm:$0xff]
    %v41 = vld [vmem:[%s1] sm:$0xff]
    %v42 = vld [vmem:[%s1 + $0x8] sm:$0xff]
    %v43 = vld [vmem:[%s1 + $0x10] sm:$0xff]
    %v44 = vld [vmem:[%s1 + $0x18] sm:$0xff]
    %vm45 = vcmask 261120
    %v47 = vsel %vm45, %v25, 0
    %v50 = vsel %vm45, %v26, 0
    %v53 = vsel %vm45, %v27, 0
    %v56 = vsel %vm45, %v28, 0
    %v59 = vsel %vm45, %v29, 0
    %v62 = vsel %vm45, %v30, 0
    %v65 = vsel %vm45, %v31, 0
    %v68 = vsel %vm45, %v32, 0
    %v71 = vsel %vm45, %v33, 0
    %v74 = vsel %vm45, %v34, 0
    %v77 = vsel %vm45, %v35, 0
    %v80 = vsel %vm45, %v36, 0
    %v83 = vsel %vm45, %v37, 0
    %v86 = vsel %vm45, %v38, 0
    %v89 = vsel %vm45, %v39, 0
    %v92 = vsel %vm45, %v40, 0
    %94 = vmatprep.subr.mxu0 0.0
    %95 = vmatpush1.msra.mxu0 %v41
    %96 = vmatprep.subr.mxu0 0.0
    %97 = vmatpush1.msra.mxu0 %v42
    %98 = vmatprep.subr.mxu0 0.0
    %99 = vmatpush1.msra.mxu0 %v43
    %100 = vmatprep.subr.mxu0 0.0
    %101 = vmatpush1.msra.mxu0 %v44
    %102 = vmatprep.subr.mxu0 0.0
    %103 = vmatpush1.msra.mxu0 0.0
    %104 = vmatprep.subr.mxu0 0.0
    %105 = vmatpush1.msra.mxu0 0.0
    %106 = vmatprep.subr.mxu0 0.0
    %107 = vmatpush1.msra.mxu0 0.0
    %108 = vmatprep.subr.mxu0 0.0
    %109 = vmatpush1.msra.mxu0 0.0
    %110 = vmatprep.subr.mxu0 0.0
    %111 = vmatpush1.msra.mxu0 0.0
    %112 = vmatprep.subr.mxu0 0.0
    %113 = vmatpush1.msra.mxu0 0.0
    %114 = vmatprep.subr.mxu0 0.0
    %115 = vmatpush1.msra.mxu0 0.0
    %116 = vmatprep.subr.mxu0 0.0
    %117 = vmatpush1.msra.mxu0 0.0
    %118 = vmatprep.subr.mxu0 0.0
    %119 = vmatpush1.msra.mxu0 0.0
    %120 = vmatprep.subr.mxu0 0.0
    %121 = vmatpush1.msra.mxu0 0.0
    %122 = vmatprep.subr.mxu0 0.0
    %123 = vmatpush1.msra.mxu0 0.0
    %124 = vmatprep.subr.mxu0 0.0
    %125 = vmatpush1.msra.mxu0 0.0
    %126 = vmatprep.subr.mxu0 0.0
    %127 = vmatpush1.msra.mxu0 0.0
    %128 = vmatprep.subr.mxu0 0.0
    %129 = vmatpush1.msra.mxu0 0.0
    %130 = vmatprep.subr.mxu0 0.0
    %131 = vmatpush1.msra.mxu0 0.0
    %132 = vmatprep.subr.mxu0 0.0
    %133 = vmatpush1.msra.mxu0 0.0
    %134 = vmatprep.subr.mxu0 0.0
    %135 = vmatpush1.msra.mxu0 0.0
    %136 = vmatprep.subr.mxu0 0.0
    %137 = vmatpush1.msra.mxu0 0.0
    %138 = vmatprep.subr.mxu0 0.0
    %139 = vmatpush1.msra.mxu0 0.0
    %140 = vmatprep.subr.mxu0 0.0
    %141 = vmatpush1.msra.mxu0 0.0
    %142 = vmatprep.subr.mxu0 0.0
    %143 = vmatpush1.msra.mxu0 0.0
    %144 = vmatprep.subr.mxu0 0.0
    %145 = vmatpush1.msra.mxu0 0.0
    %146 = vmatprep.subr.mxu0 0.0
    %147 = vmatpush1.msra.mxu0 0.0
    %148 = vmatprep.subr.mxu0 0.0
    %149 = vmatpush1.msra.mxu0 0.0
    %150 = vmatprep.subr.mxu0 0.0
    %151 = vmatpush1.msra.mxu0 0.0
    %152 = vmatprep.subr.mxu0 0.0
    %153 = vmatpush1.msra.mxu0 0.0
    %154 = vmatprep.subr.mxu0 0.0
    %155 = vmatpush1.msra.mxu0 0.0
    %156 = vmatprep.subr.mxu0 0.0
    %157 = vmatpush1.msra.mxu0 0.0
    %158 = vmatprep.mubr.f32.mxu0 0.0
    %159 = vmatmul.mubr.f32.gmra.mrb[0].mxu0 %v47
    %v160 = vpop.f32.mrb[0].mxu0
    %v161 = vadd.f32 0.0, %v160
    %v162 = vpop.f32.mrb[0].mxu0
    %163 = vmatprep.mubr.f32.mxu0 0.0
    %164 = vmatmul.mubr.f32.gmra.mrb[0].mxu0 %v50
    %v165 = vpop.f32.mrb[0].mxu0
    %v166 = vadd.f32 0.0, %v165
    %v167 = vpop.f32.mrb[0].mxu0
    %168 = vmatprep.mubr.f32.mxu0 0.0
    %169 = vmatmul.mubr.f32.gmra.mrb[0].mxu0 %v53
    %v170 = vpop.f32.mrb[0].mxu0
    %v171 = vadd.f32 0.0, %v170
    %v172 = vpop.f32.mrb[0].mxu0
    %173 = vmatprep.mubr.f32.mxu0 0.0
    %174 = vmatmul.mubr.f32.gmra.mrb[0].mxu0 %v56
    %v175 = vpop.f32.mrb[0].mxu0
    %v176 = vadd.f32 0.0, %v175
    %v177 = vpop.f32.mrb[0].mxu0
    %178 = vmatprep.mubr.f32.mxu0 0.0
    %179 = vmatmul.mubr.f32.gmra.mrb[0].mxu0 %v59
    %v180 = vpop.f32.mrb[0].mxu0
    %v181 = vadd.f32 0.0, %v180
    %v182 = vpop.f32.mrb[0].mxu0
    %183 = vmatprep.mubr.f32.mxu0 0.0
    %184 = vmatmul.mubr.f32.gmra.mrb[0].mxu0 %v62
    %v185 = vpop.f32.mrb[0].mxu0
    %v186 = vadd.f32 0.0, %v185
    %v187 = vpop.f32.mrb[0].mxu0
    %188 = vmatprep.mubr.f32.mxu0 0.0
    %189 = vmatmul.mubr.f32.gmra.mrb[0].mxu0 %v65
    %v190 = vpop.f32.mrb[0].mxu0
    %v191 = vadd.f32 0.0, %v190
    %v192 = vpop.f32.mrb[0].mxu0
    %193 = vmatprep.mubr.f32.mxu0 0.0
    %194 = vmatmul.mubr.f32.gmra.mrb[0].mxu0 %v68
    %v195 = vpop.f32.mrb[0].mxu0
    %v196 = vadd.f32 0.0, %v195
    %v197 = vpop.f32.mrb[0].mxu0
    %198 = vmatprep.mubr.f32.mxu0 0.0
    %199 = vmatmul.mubr.f32.gmra.mrb[0].mxu0 %v71
    %v200 = vpop.f32.mrb[0].mxu0
    %v201 = vadd.f32 0.0, %v200
    %v202 = vpop.f32.mrb[0].mxu0
    %203 = vmatprep.mubr.f32.mxu0 0.0
    %204 = vmatmul.mubr.f32.gmra.mrb[0].mxu0 %v74
    %v205 = vpop.f32.mrb[0].mxu0
    %v206 = vadd.f32 0.0, %v205
    %v207 = vpop.f32.mrb[0].mxu0
    %208 = vmatprep.mubr.f32.mxu0 0.0
    %209 = vmatmul.mubr.f32.gmra.mrb[0].mxu0 %v77
    %v210 = vpop.f32.mrb[0].mxu0
    %v211 = vadd.f32 0.0, %v210
    %v212 = vpop.f32.mrb[0].mxu0
    %213 = vmatprep.mubr.f32.mxu0 0.0
    %214 = vmatmul.mubr.f32.gmra.mrb[0].mxu0 %v80
    %v215 = vpop.f32.mrb[0].mxu0
    %v216 = vadd.f32 0.0, %v215
    %v217 = vpop.f32.mrb[0].mxu0
    %218 = vmatprep.mubr.f32.mxu0 0.0
    %219 = vmatmul.mubr.f32.gmra.mrb[0].mxu0 %v83
    %v220 = vpop.f32.mrb[0].mxu0
    %v221 = vadd.f32 0.0, %v220
    %v222 = vpop.f32.mrb[0].mxu0
    %223 = vmatprep.mubr.f32.mxu0 0.0
    %224 = vmatmul.mubr.f32.gmra.mrb[0].mxu0 %v86
    %v225 = vpop.f32.mrb[0].mxu0
    %v226 = vadd.f32 0.0, %v225
    %v227 = vpop.f32.mrb[0].mxu0
    %228 = vmatprep.mubr.f32.mxu0 0.0
    %229 = vmatmul.mubr.f32.gmra.mrb[0].mxu0 %v89
    %v230 = vpop.f32.mrb[0].mxu0
    %v231 = vadd.f32 0.0, %v230
    %v232 = vpop.f32.mrb[0].mxu0
    %233 = vmatprep.mubr.f32.mxu0 0.0
    %234 = vmatmul.mubr.f32.gmra.mrb[0].mxu0 %v92
    %v235 = vpop.f32.mrb[0].mxu0
    %v236 = vadd.f32 0.0, %v235
    %v237 = vpop.f32.mrb[0].mxu0
    %238 = vdwg.mxu0
    %v239 = vld [vmem:[%s4] sm:$0x1]
    %v240 = vld [vmem:[%s4 + $0x1] sm:$0x1]
    %v241 = vlaneseq
    %v242 = vshrl.u32 %v241, 7
    %v243 = vsub.s32 0, %v242
    %v244 = vrot.slane %v239, %v243
    %v245 = vadd.f32 %v161, %v244
    %v246 = vadd.f32 %v166, %v244
    %v247 = vadd.f32 %v171, %v244
    %v248 = vadd.f32 %v176, %v244
    %v249 = vadd.f32 %v181, %v244
    %v250 = vadd.f32 %v186, %v244
    %v251 = vadd.f32 %v191, %v244
    %v252 = vadd.f32 %v196, %v244
    %v253 = vadd.f32 %v201, %v244
    %v254 = vadd.f32 %v206, %v244
    %v255 = vadd.f32 %v211, %v244
    %v256 = vadd.f32 %v216, %v244
    %v257 = vadd.f32 %v221, %v244
    %v258 = vadd.f32 %v226, %v244
    %v259 = vadd.f32 %v231, %v244
    %v260 = vadd.f32 %v236, %v244
    %v261 = vtanh.pop %v245
    %v262 = vtanh.pop %v246
    %v263 = vtanh.pop %v247
    %v264 = vtanh.pop %v248
    %v265 = vtanh.pop %v249
    %v266 = vtanh.pop %v250
    %v267 = vtanh.pop %v251
    %v268 = vtanh.pop %v252
    %v269 = vtanh.pop %v253
    %v270 = vtanh.pop %v254
    %v271 = vtanh.pop %v255
    %v272 = vtanh.pop %v256
    %v273 = vtanh.pop %v257
    %v274 = vtanh.pop %v258
    %v275 = vtanh.pop %v259
    %v276 = vtanh.pop %v260
    %v277 = vld [vmem:[%s2] sm:$0xff]
    %v278 = vld [vmem:[%s2 + $0x8] sm:$0xff]
    %v279 = vld [vmem:[%s2 + $0x10] sm:$0xff]
    %v280 = vld [vmem:[%s2 + $0x18] sm:$0xff]
    %297 = vrot.lane.b32.xlu0 %v161, 96
    %v298 = vpop.permute.xlu0 %297
    %299 = vrot.lane.b32.xlu0 %v166, 96
    %v300 = vpop.permute.xlu0 %299
    %301 = vrot.lane.b32.xlu0 %v171, 96
    %v302 = vpop.permute.xlu0 %301
    %303 = vrot.lane.b32.xlu0 %v176, 96
    %v304 = vpop.permute.xlu0 %303
    %305 = vrot.lane.b32.xlu0 %v181, 96
    %v306 = vpop.permute.xlu0 %305
    %307 = vrot.lane.b32.xlu0 %v186, 96
    %v308 = vpop.permute.xlu0 %307
    %309 = vrot.lane.b32.xlu0 %v191, 96
    %v310 = vpop.permute.xlu0 %309
    %311 = vrot.lane.b32.xlu0 %v196, 96
    %v312 = vpop.permute.xlu0 %311
    %313 = vrot.lane.b32.xlu0 %v201, 96
    %v314 = vpop.permute.xlu0 %313
    %315 = vrot.lane.b32.xlu0 %v206, 96
    %v316 = vpop.permute.xlu0 %315
    %317 = vrot.lane.b32.xlu0 %v211, 96
    %v318 = vpop.permute.xlu0 %317
    %319 = vrot.lane.b32.xlu0 %v216, 96
    %v320 = vpop.permute.xlu0 %319
    %321 = vrot.lane.b32.xlu0 %v221, 96
    %v322 = vpop.permute.xlu0 %321
    %323 = vrot.lane.b32.xlu0 %v226, 96
    %v324 = vpop.permute.xlu0 %323
    %325 = vrot.lane.b32.xlu0 %v231, 96
    %v326 = vpop.permute.xlu0 %325
    %327 = vrot.lane.b32.xlu0 %v236, 96
    %v328 = vpop.permute.xlu0 %327
    %v346 = vsel %vm45, %v261, 0
    %v349 = vsel %vm45, %v262, 0
    %v352 = vsel %vm45, %v263, 0
    %v355 = vsel %vm45, %v264, 0
    %v358 = vsel %vm45, %v265, 0
    %v361 = vsel %vm45, %v266, 0
    %v364 = vsel %vm45, %v267, 0
    %v367 = vsel %vm45, %v268, 0
    %v370 = vsel %vm45, %v269, 0
    %v373 = vsel %vm45, %v270, 0
    %v376 = vsel %vm45, %v271, 0
    %v379 = vsel %vm45, %v272, 0
    %v382 = vsel %vm45, %v273, 0
    %v385 = vsel %vm45, %v274, 0
    %v388 = vsel %vm45, %v275, 0
    %v391 = vsel %vm45, %v276, 0
    %393 = vmatprep.subr.mxu0 0.0
    %394 = vmatpush1.msra.mxu0 %v277
    %395 = vmatprep.subr.mxu0 0.0
    %396 = vmatpush1.msra.mxu0 %v278
    %397 = vmatprep.subr.mxu0 0.0
    %398 = vmatpush1.msra.mxu0 %v279
    %399 = vmatprep.subr.mxu0 0.0
    %400 = vmatpush1.msra.mxu0 %v280
    %401 = vmatprep.subr.mxu0 0.0
    %402 = vmatpush1.msra.mxu0 0.0
    %403 = vmatprep.subr.mxu0 0.0
    %404 = vmatpush1.msra.mxu0 0.0
    %405 = vmatprep.subr.mxu0 0.0
    %406 = vmatpush1.msra.mxu0 0.0
    %407 = vmatprep.subr.mxu0 0.0
    %408 = vmatpush1.msra.mxu0 0.0
    %409 = vmatprep.subr.mxu0 0.0
    %410 = vmatpush1.msra.mxu0 0.0
    %411 = vmatprep.subr.mxu0 0.0
    %412 = vmatpush1.msra.mxu0 0.0
    %413 = vmatprep.subr.mxu0 0.0
    %414 = vmatpush1.msra.mxu0 0.0
    %415 = vmatprep.subr.mxu0 0.0
    %416 = vmatpush1.msra.mxu0 0.0
    %417 = vmatprep.subr.mxu0 0.0
    %418 = vmatpush1.msra.mxu0 0.0
    %419 = vmatprep.subr.mxu0 0.0
    %420 = vmatpush1.msra.mxu0 0.0
    %421 = vmatprep.subr.mxu0 0.0
    %422 = vmatpush1.msra.mxu0 0.0
    %423 = vmatprep.subr.mxu0 0.0
    %424 = vmatpush1.msra.mxu0 0.0
    %425 = vmatprep.subr.mxu0 0.0
    %426 = vmatpush1.msra.mxu0 0.0
    %427 = vmatprep.subr.mxu0 0.0
    %428 = vmatpush1.msra.mxu0 0.0
    %429 = vmatprep.subr.mxu0 0.0
    %430 = vmatpush1.msra.mxu0 0.0
    %431 = vmatprep.subr.mxu0 0.0
    %432 = vmatpush1.msra.mxu0 0.0
    %433 = vmatprep.subr.mxu0 0.0
    %434 = vmatpush1.msra.mxu0 0.0
    %435 = vmatprep.subr.mxu0 0.0
    %436 = vmatpush1.msra.mxu0 0.0
    %437 = vmatprep.subr.mxu0 0.0
    %438 = vmatpush1.msra.mxu0 0.0
    %439 = vmatprep.subr.mxu0 0.0
    %440 = vmatpush1.msra.mxu0 0.0
    %441 = vmatprep.subr.mxu0 0.0
    %442 = vmatpush1.msra.mxu0 0.0
    %443 = vmatprep.subr.mxu0 0.0
    %444 = vmatpush1.msra.mxu0 0.0
    %445 = vmatprep.subr.mxu0 0.0
    %446 = vmatpush1.msra.mxu0 0.0
    %447 = vmatprep.subr.mxu0 0.0
    %448 = vmatpush1.msra.mxu0 0.0
    %449 = vmatprep.subr.mxu0 0.0
    %450 = vmatpush1.msra.mxu0 0.0
    %451 = vmatprep.subr.mxu0 0.0
    %452 = vmatpush1.msra.mxu0 0.0
    %453 = vmatprep.subr.mxu0 0.0
    %454 = vmatpush1.msra.mxu0 0.0
    %455 = vmatprep.subr.mxu0 0.0
    %456 = vmatpush1.msra.mxu0 0.0
    %457 = vmatprep.mubr.f32.mxu0 0.0
    %458 = vmatmul.mubr.f32.gmra.mrb[0].mxu0 %v346
    %v459 = vpop.f32.mrb[0].mxu0
    %v460 = vadd.f32 %v298, %v459
    %v461 = vpop.f32.mrb[0].mxu0
    %462 = vmatprep.mubr.f32.mxu0 0.0
    %463 = vmatmul.mubr.f32.gmra.mrb[0].mxu0 %v349
    %v464 = vpop.f32.mrb[0].mxu0
    %v465 = vadd.f32 %v300, %v464
    %v466 = vpop.f32.mrb[0].mxu0
    %467 = vmatprep.mubr.f32.mxu0 0.0
    %468 = vmatmul.mubr.f32.gmra.mrb[0].mxu0 %v352
    %v469 = vpop.f32.mrb[0].mxu0
    %v470 = vadd.f32 %v302, %v469
    %v471 = vpop.f32.mrb[0].mxu0
    %472 = vmatprep.mubr.f32.mxu0 0.0
    %473 = vmatmul.mubr.f32.gmra.mrb[0].mxu0 %v355
    %v474 = vpop.f32.mrb[0].mxu0
    %v475 = vadd.f32 %v304, %v474
    %v476 = vpop.f32.mrb[0].mxu0
    %477 = vmatprep.mubr.f32.mxu0 0.0
    %478 = vmatmul.mubr.f32.gmra.mrb[0].mxu0 %v358
    %v479 = vpop.f32.mrb[0].mxu0
    %v480 = vadd.f32 %v306, %v479
    %v481 = vpop.f32.mrb[0].mxu0
    %482 = vmatprep.mubr.f32.mxu0 0.0
    %483 = vmatmul.mubr.f32.gmra.mrb[0].mxu0 %v361
    %v484 = vpop.f32.mrb[0].mxu0
    %v485 = vadd.f32 %v308, %v484
    %v486 = vpop.f32.mrb[0].mxu0
    %487 = vmatprep.mubr.f32.mxu0 0.0
    %488 = vmatmul.mubr.f32.gmra.mrb[0].mxu0 %v364
    %v489 = vpop.f32.mrb[0].mxu0
    %v490 = vadd.f32 %v310, %v489
    %v491 = vpop.f32.mrb[0].mxu0
    %492 = vmatprep.mubr.f32.mxu0 0.0
    %493 = vmatmul.mubr.f32.gmra.mrb[0].mxu0 %v367
    %v494 = vpop.f32.mrb[0].mxu0
    %v495 = vadd.f32 %v312, %v494
    %v496 = vpop.f32.mrb[0].mxu0
    %497 = vmatprep.mubr.f32.mxu0 0.0
    %498 = vmatmul.mubr.f32.gmra.mrb[0].mxu0 %v370
    %v499 = vpop.f32.mrb[0].mxu0
    %v500 = vadd.f32 %v314, %v499
    %v501 = vpop.f32.mrb[0].mxu0
    %502 = vmatprep.mubr.f32.mxu0 0.0
    %503 = vmatmul.mubr.f32.gmra.mrb[0].mxu0 %v373
    %v504 = vpop.f32.mrb[0].mxu0
    %v505 = vadd.f32 %v316, %v504
    %v506 = vpop.f32.mrb[0].mxu0
    %507 = vmatprep.mubr.f32.mxu0 0.0
    %508 = vmatmul.mubr.f32.gmra.mrb[0].mxu0 %v376
    %v509 = vpop.f32.mrb[0].mxu0
    %v510 = vadd.f32 %v318, %v509
    %v511 = vpop.f32.mrb[0].mxu0
    %512 = vmatprep.mubr.f32.mxu0 0.0
    %513 = vmatmul.mubr.f32.gmra.mrb[0].mxu0 %v379
    %v514 = vpop.f32.mrb[0].mxu0
    %v515 = vadd.f32 %v320, %v514
    %v516 = vpop.f32.mrb[0].mxu0
    %517 = vmatprep.mubr.f32.mxu0 0.0
    %518 = vmatmul.mubr.f32.gmra.mrb[0].mxu0 %v382
    %v519 = vpop.f32.mrb[0].mxu0
    %v520 = vadd.f32 %v322, %v519
    %v521 = vpop.f32.mrb[0].mxu0
    %522 = vmatprep.mubr.f32.mxu0 0.0
    %523 = vmatmul.mubr.f32.gmra.mrb[0].mxu0 %v385
    %v524 = vpop.f32.mrb[0].mxu0
    %v525 = vadd.f32 %v324, %v524
    %v526 = vpop.f32.mrb[0].mxu0
    %527 = vmatprep.mubr.f32.mxu0 0.0
    %528 = vmatmul.mubr.f32.gmra.mrb[0].mxu0 %v388
    %v529 = vpop.f32.mrb[0].mxu0
    %v530 = vadd.f32 %v326, %v529
    %v531 = vpop.f32.mrb[0].mxu0
    %532 = vmatprep.mubr.f32.mxu0 0.0
    %533 = vmatmul.mubr.f32.gmra.mrb[0].mxu0 %v391
    %v534 = vpop.f32.mrb[0].mxu0
    %v535 = vadd.f32 %v328, %v534
    %v536 = vpop.f32.mrb[0].mxu0
    %537 = vdwg.mxu0
    %v538 = vlaneseq
    %v539 = vshrl.u32 %v538, 7
    %v540 = vsub.s32 0, %v539
    %v541 = vrot.slane %v240, %v540
    %v542 = vadd.f32 %v460, %v541
    %v543 = vadd.f32 %v465, %v541
    %v544 = vadd.f32 %v470, %v541
    %v545 = vadd.f32 %v475, %v541
    %v546 = vadd.f32 %v480, %v541
    %v547 = vadd.f32 %v485, %v541
    %v548 = vadd.f32 %v490, %v541
    %v549 = vadd.f32 %v495, %v541
    %v550 = vadd.f32 %v500, %v541
    %v551 = vadd.f32 %v505, %v541
    %v552 = vadd.f32 %v510, %v541
    %v553 = vadd.f32 %v515, %v541
    %v554 = vadd.f32 %v520, %v541
    %v555 = vadd.f32 %v525, %v541
    %v556 = vadd.f32 %v530, %v541
    %v557 = vadd.f32 %v535, %v541
    %v558 = vtanh.pop %v542
    %v559 = vtanh.pop %v543
    %v560 = vtanh.pop %v544
    %v561 = vtanh.pop %v545
    %v562 = vtanh.pop %v546
    %v563 = vtanh.pop %v547
    %v564 = vtanh.pop %v548
    %v565 = vtanh.pop %v549
    %v566 = vtanh.pop %v550
    %v567 = vtanh.pop %v551
    %v568 = vtanh.pop %v552
    %v569 = vtanh.pop %v553
    %v570 = vtanh.pop %v554
    %v571 = vtanh.pop %v555
    %v572 = vtanh.pop %v556
    %v573 = vtanh.pop %v557
    %v574 = vld [vmem:[%s3] sm:$0x1]
    %v576 = vlaneseq
    %v577 = vshrl.u32 %v576, 7
    %v578 = vsub.s32 0, %v577
    %v579 = vrot.slane %v574, %v578
    %v581 = vmul.f32 %v558, %v579
    %v582 = vmul.f32 %v559, %v579
    %v583 = vmul.f32 %v560, %v579
    %v584 = vmul.f32 %v561, %v579
    %v585 = vmul.f32 %v562, %v579
    %v586 = vmul.f32 %v563, %v579
    %v587 = vmul.f32 %v564, %v579
    %v588 = vmul.f32 %v565, %v579
    %v589 = vmul.f32 %v566, %v579
    %v590 = vmul.f32 %v567, %v579
    %v591 = vmul.f32 %v568, %v579
    %v592 = vmul.f32 %v569, %v579
    %v593 = vmul.f32 %v570, %v579
    %v594 = vmul.f32 %v571, %v579
    %v595 = vmul.f32 %v572, %v579
    %v596 = vmul.f32 %v573, %v579
    %v597 = vsel %vm45, %v581, 0.0
    %598 = vadd.xlane.f32.xlu0 %v597
    %v599 = vpop.xlane.xlu0 %598
    %v600 = vsel %vm45, %v582, 0.0
    %601 = vadd.xlane.f32.xlu0 %v600
    %v602 = vpop.xlane.xlu0 %601
    %v603 = vsel %vm45, %v583, 0.0
    %604 = vadd.xlane.f32.xlu0 %v603
    %v605 = vpop.xlane.xlu0 %604
    %v606 = vsel %vm45, %v584, 0.0
    %607 = vadd.xlane.f32.xlu0 %v606
    %v608 = vpop.xlane.xlu0 %607
    %v609 = vsel %vm45, %v585, 0.0
    %610 = vadd.xlane.f32.xlu0 %v609
    %v611 = vpop.xlane.xlu0 %610
    %v612 = vsel %vm45, %v586, 0.0
    %613 = vadd.xlane.f32.xlu0 %v612
    %v614 = vpop.xlane.xlu0 %613
    %v615 = vsel %vm45, %v587, 0.0
    %616 = vadd.xlane.f32.xlu0 %v615
    %v617 = vpop.xlane.xlu0 %616
    %v618 = vsel %vm45, %v588, 0.0
    %619 = vadd.xlane.f32.xlu0 %v618
    %v620 = vpop.xlane.xlu0 %619
    %v621 = vsel %vm45, %v589, 0.0
    %622 = vadd.xlane.f32.xlu0 %v621
    %v623 = vpop.xlane.xlu0 %622
    %v624 = vsel %vm45, %v590, 0.0
    %625 = vadd.xlane.f32.xlu0 %v624
    %v626 = vpop.xlane.xlu0 %625
    %v627 = vsel %vm45, %v591, 0.0
    %628 = vadd.xlane.f32.xlu0 %v627
    %v629 = vpop.xlane.xlu0 %628
    %v630 = vsel %vm45, %v592, 0.0
    %631 = vadd.xlane.f32.xlu0 %v630
    %v632 = vpop.xlane.xlu0 %631
    %v633 = vsel %vm45, %v593, 0.0
    %634 = vadd.xlane.f32.xlu0 %v633
    %v635 = vpop.xlane.xlu0 %634
    %v636 = vsel %vm45, %v594, 0.0
    %637 = vadd.xlane.f32.xlu0 %v636
    %v638 = vpop.xlane.xlu0 %637
    %v639 = vsel %vm45, %v595, 0.0
    %640 = vadd.xlane.f32.xlu0 %v639
    %v641 = vpop.xlane.xlu0 %640
    %v642 = vsel %vm45, %v596, 0.0
    %643 = vadd.xlane.f32.xlu0 %v642
    %v644 = vpop.xlane.xlu0 %643
    %s645 = sld [smem:[#allocation2]]
    %v646 = vstv %s645
    %v647 = vadd.f32 %v599, %v646
    %v648 = vadd.f32 %v602, %v646
    %v649 = vadd.f32 %v605, %v646
    %v650 = vadd.f32 %v608, %v646
    %v651 = vadd.f32 %v611, %v646
    %v652 = vadd.f32 %v614, %v646
    %v653 = vadd.f32 %v617, %v646
    %v654 = vadd.f32 %v620, %v646
    %v655 = vadd.f32 %v623, %v646
    %v656 = vadd.f32 %v626, %v646
    %v657 = vadd.f32 %v629, %v646
    %v658 = vadd.f32 %v632, %v646
    %v659 = vadd.f32 %v635, %v646
    %v660 = vadd.f32 %v638, %v646
    %v661 = vadd.f32 %v641, %v646
    %v662 = vadd.f32 %v644, %v646
    %v679 = vlaneseq
    %v680 = vand.u32 %v679, 127
    %v681 = vlaneseq
    %v682 = vshrl.u32 %v681, 7
    %v683 = vsub.s32 %v680, %v682
    %v684 = vrot.slane %v647, %v683
    %v685 = vadd.s32 %v680, 4294967288
    %v686 = vlaneseq
    %v687 = vshrl.u32 %v686, 7
    %v688 = vsub.s32 %v685, %v687
    %v689 = vrot.slane %v648, %v688
    %vm690 = vcmask 130112
    %v691 = vsel %vm690, %v689, %v684
    %v692 = vadd.s32 %v680, 4294967280
    %v693 = vlaneseq
    %v694 = vshrl.u32 %v693, 7
    %v695 = vsub.s32 %v692, %v694
    %v696 = vrot.slane %v649, %v695
    %vm697 = vcmask 195712
    %v698 = vsel %vm697, %v696, %v691
    %v699 = vadd.s32 %v680, 4294967272
    %v700 = vlaneseq
    %v701 = vshrl.u32 %v700, 7
    %v702 = vsub.s32 %v699, %v701
    %v703 = vrot.slane %v650, %v702
    %vm704 = vcmask 261312
    %v705 = vsel %vm704, %v703, %v698
    %v706 = vadd.s32 %v680, 4294967264
    %v707 = vlaneseq
    %v708 = vshrl.u32 %v707, 7
    %v709 = vsub.s32 %v706, %v708
    %v710 = vrot.slane %v651, %v709
    %vm711 = vcmask 326912
    %v712 = vsel %vm711, %v710, %v705
    %v713 = vadd.s32 %v680, 4294967256
    %v714 = vlaneseq
    %v715 = vshrl.u32 %v714, 7
    %v716 = vsub.s32 %v713, %v715
    %v717 = vrot.slane %v652, %v716
    %vm718 = vcmask 392512
    %v719 = vsel %vm718, %v717, %v712
    %v720 = vadd.s32 %v680, 4294967248
    %v721 = vlaneseq
    %v722 = vshrl.u32 %v721, 7
    %v723 = vsub.s32 %v720, %v722
    %v724 = vrot.slane %v653, %v723
    %vm725 = vcmask 458112
    %v726 = vsel %vm725, %v724, %v719
    %v727 = vadd.s32 %v680, 4294967240
    %v728 = vlaneseq
    %v729 = vshrl.u32 %v728, 7
    %v730 = vsub.s32 %v727, %v729
    %v731 = vrot.slane %v654, %v730
    %vm732 = vcmask 523712
    %v733 = vsel %vm732, %v731, %v726
    %v734 = vadd.s32 %v680, 4294967232
    %v735 = vlaneseq
    %v736 = vshrl.u32 %v735, 7
    %v737 = vsub.s32 %v734, %v736
    %v738 = vrot.slane %v655, %v737
    %vm739 = vcmask 589312
    %v740 = vsel %vm739, %v738, %v733
    %v741 = vadd.s32 %v680, 4294967224
    %v742 = vlaneseq
    %v743 = vshrl.u32 %v742, 7
    %v744 = vsub.s32 %v741, %v743
    %v745 = vrot.slane %v656, %v744
    %vm746 = vcmask 654912
    %v747 = vsel %vm746, %v745, %v740
    %v748 = vadd.s32 %v680, 4294967216
    %v749 = vlaneseq
    %v750 = vshrl.u32 %v749, 7
    %v751 = vsub.s32 %v748, %v750
    %v752 = vrot.slane %v657, %v751
    %vm753 = vcmask 720512
    %v754 = vsel %vm753, %v752, %v747
    %v755 = vadd.s32 %v680, 4294967208
    %v756 = vlaneseq
    %v757 = vshrl.u32 %v756, 7
    %v758 = vsub.s32 %v755, %v757
    %v759 = vrot.slane %v658, %v758
    %vm760 = vcmask 786112
    %v761 = vsel %vm760, %v759, %v754
    %v762 = vadd.s32 %v680, 4294967200
    %v763 = vlaneseq
    %v764 = vshrl.u32 %v763, 7
    %v765 = vsub.s32 %v762, %v764
    %v766 = vrot.slane %v659, %v765
    %vm767 = vcmask 851712
    %v768 = vsel %vm767, %v766, %v761
    %v769 = vadd.s32 %v680, 4294967192
    %v770 = vlaneseq
    %v771 = vshrl.u32 %v770, 7
    %v772 = vsub.s32 %v769, %v771
    %v773 = vrot.slane %v660, %v772
    %vm774 = vcmask 917312
    %v775 = vsel %vm774, %v773, %v768
    %v776 = vadd.s32 %v680, 4294967184
    %v777 = vlaneseq
    %v778 = vshrl.u32 %v777, 7
    %v779 = vsub.s32 %v776, %v778
    %v780 = vrot.slane %v661, %v779
    %vm781 = vcmask 982912
    %v782 = vsel %vm781, %v780, %v775
    %v783 = vadd.s32 %v680, 4294967176
    %v784 = vlaneseq
    %v785 = vshrl.u32 %v784, 7
    %v786 = vsub.s32 %v783, %v785
    %v787 = vrot.slane %v662, %v786
    %vm788 = vcmask 1048512
    %v789 = vsel %vm788, %v787, %v782
    %791 = vst [vmem:[#allocation3] sm:$0x1] %v789
    // Predicated region
    $region26: #{tpu_custom_call.1} parent=1 // pred_check
      _
    $region27: #{tpu_custom_call.1} parent=1 // pred_check_branch
      %793 = sbr.rel (0) target = $region29
    $region28: #{tpu_custom_call.1} parent=1 // pred_region
      %s795 = ssub.s32 16, 16
      %796 = vsyncadd [#allocation4], %s795
      %s798 = sshll.u32 [#allocation3], 4
      %s799 = int_to_ptr.vmem [resolvable:$true] %s798
      %801 = dma.vmem_to_hbm [thread:$0]  %s799, 16, %s6, [#allocation4]
    $region29: #{tpu_custom_call.1} parent=1 // pred_fallthru
      _
    // Predicated region
    $region30: #{tpu_custom_call.1} parent=1 // pred_check
      _
    $region31: #{tpu_custom_call.1} parent=1 // pred_check_branch
      %803 = sbr.rel (0) target = $region33
    $region32: #{tpu_custom_call.1} parent=1 // pred_region
      %804 = dma.done [#allocation4], 16
    $region33: #{tpu_custom_call.1} parent=1 // pred_fallthru
      _
    %805 = vsyncpa [#allocation4], 1

</llo_original>
